<compile_context>
chip_gen: v7x
topology: tpu7x:2x2x1
jax: 0.10.0
libtpu: 0.0.40
codegen_flags: <defaults>
</compile_context>

<pallas_src>
import jax
import jax.numpy as jnp
from jax import lax
from jax.experimental import pallas as pl
from jax.experimental.pallas import tpu as pltpu


# ---------------------------------------------------------------------------
# Kernels
# ---------------------------------------------------------------------------

def _sigmoid_f32(s):
    # EUP-only sigmoid: one tanh (EUP slot) + cheap VPU mul/add; no divide.
    return 0.5 * (jnp.tanh(0.5 * s) + 1.0)


def _gram_sigmoid_slab_kernel(xs_ref, o_ref):
    """Resident-slab kernel.

    xs_ref: (1, n_rows, D)   full per-batch slab of x (resident across i)
    o_ref:  (1, tm, n_rows)  output row-stripe i
    """
    tm = o_ref.shape[1]
    start = pl.multiple_of(pl.program_id(1) * tm, tm)
    a = xs_ref[0, pl.ds(start, tm), :]                       # (tm, D) row tile
    b = xs_ref[0]                                            # (n_rows, D)
    s = lax.dot_general(a, b, (((1,), (1,)), ((), ())),
                        preferred_element_type=jnp.float32)  # (tm, n_rows) f32
    o_ref[0] = _sigmoid_f32(s).astype(o_ref.dtype)


def _gram_sigmoid_tiled_kernel(xr_ref, xc_ref, o_ref):
    """Doubly-tiled fallback (per-batch slab does not fit in VMEM).

    xr_ref: (1, tm, D), xc_ref: (1, tn, D), o_ref: (1, tm, tn)
    """
    s = lax.dot_general(xr_ref[0], xc_ref[0], (((1,), (1,)), ((), ())),
                        preferred_element_type=jnp.float32)
    o_ref[0] = _sigmoid_f32(s).astype(o_ref.dtype)


# ---------------------------------------------------------------------------
# Wrapper
# ---------------------------------------------------------------------------

def _round_up(v, m):
    return ((v + m - 1) // m) * m


def _vmem_budget():
    """Generation-aware VMEM request + per-step working-set budget."""
    try:
        cap = int(pltpu.get_tpu_info().vmem_capacity_bytes)
    except Exception:
        cap = 64 * 1024 * 1024            # conservative: v7x per-TC physical
    # Never request the full physical VMEM (compiler needs internal scratch):
    # v7x (64 MiB) -> 48 MiB, v5e/v6e (128 MiB) -> 96 MiB.
    limit = min(int(cap * 0.75), 96 * 1024 * 1024)
    budget = int(limit * 0.85)            # headroom for pipeline buffers/meta
    return limit, budget


def stru_decoder_forward(x, adj=None):
    """sigmoid(x @ x^T) per batch element.  x: (B, N, D) -> (B, N, N)."""
    del adj  # unused by the reference forward pass
    B, N, D = x.shape
    bpe = jnp.dtype(x.dtype).itemsize
    limit, budget = _vmem_budget()

    n_pad = max(128, _round_up(N, 128))

    def slab_ws(n_rows, tm):
        # resident slab (double-buffered across b) + output windows + f32 Gram
        return (2 * n_rows * D * bpe
                + 2 * tm * n_rows * bpe
                + tm * n_rows * 4)

    plan = None  # ("slab", n_rows, tm) or ("tiled", n_rows, tm, tn)

    # Regime 1: exact (unpadded) shapes, one output stripe per batch.  No
    # padding DMA and no post-kernel unpad slice; full-extent blocks satisfy
    # the (8, 128) rule even for ragged N.
    if slab_ws(N, N) <= budget:
        plan = ("slab", N, N)

    # Regime 2: 128-padded rows/cols, row-tiled, column slab resident.
    if plan is None:
        for tm in (1024, 512, 256, 128):
            if n_pad % tm == 0 and slab_ws(n_pad, tm) <= budget:
                plan = ("slab", n_pad, tm)
                break

    # Regime 3: slab too big -> tile both operands (asymmetric: modest tm,
    # wide lane-dense tn for unmasked, wide stores).
    if plan is None:
        def tiled_ws(tm, tn):
            return (2 * (tm + tn) * D * bpe
                    + 2 * tm * tn * bpe
                    + tm * tn * 4)
        pick = None
        for tn in (1024, 512, 256, 128):
            if n_pad % tn:
                continue
            for tm in (256, 128, 512):
                if n_pad % tm == 0 and tiled_ws(tm, tn) <= budget:
                    pick = (tm, tn)
                    break
            if pick:
                break
        if pick is None:
            # TODO(synk): add a D (contraction) grid axis with an f32
            # accumulator scratch for extremely large D where even (128, D)
            # operand windows exceed the VMEM budget.
            pick = (128, 128)
        plan = ("tiled", n_pad, pick[0], pick[1])

    kind, n_rows = plan[0], plan[1]
    padded = n_rows != N
    x_in = jnp.pad(x, ((0, 0), (0, n_rows - N), (0, 0))) if padded else x

    out_bytes = B * n_rows * n_rows * bpe
    trans = B * n_rows * n_rows

    if kind == "slab":
        tm = plan[2]
        grid = (B, n_rows // tm)
        in_specs = [pl.BlockSpec((1, n_rows, D), lambda b, i: (b, 0, 0))]
        out_specs = pl.BlockSpec((1, tm, n_rows), lambda b, i: (b, i, 0))
        kernel = _gram_sigmoid_slab_kernel
        operands = (x_in,)
        in_bytes = B * n_rows * D * bpe          # slab read once per batch
        dim_sem = ("parallel", "parallel")
    else:
        _, _, tm, tn = plan
        grid = (B, n_rows // tm, n_rows // tn)
        in_specs = [pl.BlockSpec((1, tm, D), lambda b, i, j: (b, i, 0)),
                    pl.BlockSpec((1, tn, D), lambda b, i, j: (b, j, 0))]
        out_specs = pl.BlockSpec((1, tm, tn), lambda b, i, j: (b, i, j))
        kernel = _gram_sigmoid_tiled_kernel
        operands = (x_in, x_in)
        # row tiles fetched once per (b, i); column tiles refetched per step
        in_bytes = (B * n_rows * D * bpe
                    + B * (n_rows // tm) * n_rows * D * bpe)
        dim_sem = ("parallel", "parallel", "parallel")

    out_p = pl.pallas_call(
        kernel,
        out_shape=jax.ShapeDtypeStruct((B, n_rows, n_rows), x.dtype),
        grid_spec=pltpu.PrefetchScalarGridSpec(
            num_scalar_prefetch=0,
            grid=grid,
            in_specs=in_specs,
            out_specs=out_specs,
        ),
        compiler_params=pltpu.CompilerParams(
            dimension_semantics=dim_sem,
            vmem_limit_bytes=limit,
        ),
        cost_estimate=pl.CostEstimate(
            flops=2 * B * n_rows * n_rows * D,
            transcendentals=trans,
            bytes_accessed=in_bytes + out_bytes,
        ),
    )(*operands)

    if padded:
        # TODO(synk): for large non-128-aligned N this unpad is an extra XLA
        # copy over the ~N^2 output; keep the padded layout downstream / fuse
        # the unpad into the consumer when possible.
        out_p = out_p[:, :N, :N]
    return out_p


if __name__ == "__main__":
    key = jax.random.PRNGKey(0)
    kx, kadj = jax.random.split(key)

    B, N, D = 2, 8, 32                     # batch, seq, hidden
    x = jax.random.normal(kx, (B, N, D), dtype=jnp.float32)
    adj = jax.random.normal(kadj, (B, N, N), dtype=jnp.float32)  # unused

    out = stru_decoder_forward(x, adj)
    out = jax.block_until_ready(out)

    # Cross-check against plain JAX reference.
    ref = jax.nn.sigmoid(jnp.einsum("bnd,bmd->bnm", x, x))
    assert out.shape == (B, N, N)
    assert jnp.allclose(out, ref, atol=1e-5, rtol=1e-5)

    print("KERNEL_OK")
</pallas_src>

<mosaic_0001>
module attributes {stable_mosaic.version = 11 : i64} {
  func.func @_gram_sigmoid_slab_kernel(%arg0: i32, %arg1: i32, %arg2: memref<1x8x32xf32, #tpu.memory_space<vmem>>, %arg3: memref<1x8x8xf32, #tpu.memory_space<vmem>>) attributes {dimension_semantics = [#tpu.dimension_semantics<parallel>, #tpu.dimension_semantics<parallel>], iteration_bounds = array<i64: 2, 1>, scalar_prefetch = 0 : i64, scratch_operands = 0 : i64, tpu.core_type = #tpu.core_type<tc>, window_params = [{transform_indices = @transform_0, window_bounds = array<i64: 1, 8, 32>}, {transform_indices = @transform_1, window_bounds = array<i64: 1, 8, 8>}]} {
    %c8_i32 = arith.constant 8 : i32
    %0 = arith.muli %arg1, %c8_i32 : i32
    %1 = tpu.assume_multiple %0, 8 : i32
    %c0 = arith.constant 0 : index
    %2 = arith.index_cast %1 : i32 to index
    %c0_0 = arith.constant 0 : index
    %3 = vector.load %arg2[%c0, %2, %c0_0] : memref<1x8x32xf32, #tpu.memory_space<vmem>>, vector<1x8x32xf32>
    %4 = vector.shape_cast %3 : vector<1x8x32xf32> to vector<8x32xf32>
    %c0_1 = arith.constant 0 : index
    %c0_2 = arith.constant 0 : index
    %c0_3 = arith.constant 0 : index
    %5 = vector.load %arg2[%c0_1, %c0_2, %c0_3] : memref<1x8x32xf32, #tpu.memory_space<vmem>>, vector<1x8x32xf32>
    %6 = vector.shape_cast %5 : vector<1x8x32xf32> to vector<8x32xf32>
    %cst = arith.constant dense<0.000000e+00> : vector<8x8xf32>
    %7 = tpu.matmul %4, %6, %cst {dimension_numbers = #tpu.dot_dimension_numbers<[1], [1], [0], [0], [0, 0, 1, 0], [], []>} : vector<8x32xf32>, vector<8x32xf32>, vector<8x8xf32> -> vector<8x8xf32>
    %cst_4 = arith.constant 5.000000e-01 : f32
    %8 = vector.broadcast %cst_4 : f32 to vector<8x8xf32>
    %9 = arith.mulf %8, %7 : vector<8x8xf32>
    %10 = math.tanh %9 : vector<8x8xf32>
    %cst_5 = arith.constant 1.000000e+00 : f32
    %11 = vector.broadcast %cst_5 : f32 to vector<8x8xf32>
    %12 = arith.addf %10, %11 : vector<8x8xf32>
    %cst_6 = arith.constant 5.000000e-01 : f32
    %13 = vector.broadcast %cst_6 : f32 to vector<8x8xf32>
    %14 = arith.mulf %13, %12 : vector<8x8xf32>
    %c0_7 = arith.constant 0 : index
    %c0_8 = arith.constant 0 : index
    %c0_9 = arith.constant 0 : index
    %15 = vector.load %arg3[%c0_7, %c0_8, %c0_9] : memref<1x8x8xf32, #tpu.memory_space<vmem>>, vector<1x8x8xf32>
    %16 = vector.shape_cast %15 : vector<1x8x8xf32> to vector<8x8xf32>
    %17 = vector.shape_cast %14 : vector<8x8xf32> to vector<1x8x8xf32>
    tpu.vector_store %arg3[%c0_7, %c0_8, %c0_9], %17 {strides = array<i32>} : memref<1x8x8xf32, #tpu.memory_space<vmem>>, vector<1x8x8xf32>,
    return
  }
  func.func @transform_0(%arg0: i32, %arg1: i32) -> (i32, i32, i32) {
    %c0_i32 = arith.constant 0 : i32
    %c0_i32_0 = arith.constant 0 : i32
    %c0_i32_1 = arith.constant 0 : i32
    return %arg0, %c0_i32, %c0_i32_0 : i32, i32, i32
  }
  func.func @transform_1(%arg0: i32, %arg1: i32) -> (i32, i32, i32) {
    %c0_i32 = arith.constant 0 : i32
    %c0_i32_0 = arith.constant 0 : i32
    return %arg0, %arg1, %c0_i32 : i32, i32, i32
  }
}

</mosaic_0001>

<llo_original>
// kernel: tpu_custom_call.1
$region0: #{tpu_custom_call.1}
  #allocation0 [shape = 'u32[]', space=smem, size = 0x4, offset = 0x4, fixed_abs, tag = 'smem constant byte address 0x4 - core index']
  #allocation1 [shape = 'u32[144,128]{1,0:T(1,128)}', space=vmem, size = 0x12000, scoped, tag = 'internal scratch']
  %s0 = inlined_call_operand.hbm [shape: f32[2,8,32], index: 0, kind: input, shape index: {}]
  %s1 = inlined_call_operand.hbm [shape: f32[2,8,8], index: 1, kind: output, shape index: {}]
  %s2 = sld [smem:[#allocation0]]
  $region41: #{tpu_custom_call.1} parent=0
    _
  %s4 = ssub.s32 1, %s2
  %s5 = scalar_select 0, %s4, %s2
  $region1: #{tpu_custom_call.1} parent=0
    #allocation2 [shape = 'u8[8192]{0}', space=vmem, size = 0x2000, scoped, tag = 'input window, operand 0']
    #allocation3 [shape = 's32[2]{0}', space=sflag, size = 0x8, scoped, tag = 'scoped memory for tpu_custom_call.1']
    #allocation4 [shape = 's32[2]{0}', space=sflag, size = 0x8, scoped, tag = 'scoped memory for tpu_custom_call.1']
    #allocation5 [shape = 'u8[8192]{0}', space=vmem, size = 0x2000, scoped, tag = 'output window, operand 0']
    %6 = vsyncpa [#allocation3], 0
    %s7 = scalar_lea.sflag [#allocation3], 1
    %8 = vsyncpa %s7, 0
    %9 = vsyncpa [#allocation4], 0
    %s10 = scalar_lea.sflag [#allocation4], 1
    %11 = vsyncpa %s10, 0
    loop: start=0, step=1, limit=4
    $region2: #{tpu_custom_call.1} parent=1 // loop_pre_header
      _
    $region3: #{tpu_custom_call.1} parent=1 // loop_header
      %s13 = sphi 0, %s17
      %p14 = scmp.ge.s32.totalorder %s13, 4
      %s20 = sphi 0, %s32
      %s21 = sphi 0, %s28
      %s22 = sphi 0, %s20
      %s23 = sphi 0, %s21
      %s24 = sphi 0, %s22
      %s25 = sphi 0, %s23
      %s35 = sphi 0, %s37
      %s38 = sphi 0, %s35
      %s39 = sphi 0, %s38
      %s55 = sphi 0, %s39
      %s63 = sphi 0, %s65
      %s66 = sphi 0, %s63
      %s67 = sphi 0, %s66
      %s83 = sphi 0, %s67
    $region4: #{tpu_custom_call.1} parent=1 // loop_header_branch
      %16 = sbr.rel (%p14) target = $region8
    $region5: #{tpu_custom_call.1} parent=1 // loop_body
      %s18 = ssub.s32 %s13, 1
      %s19 = ssub.s32 %s13, 2
      %s26 = sadd.s32 1, %s21
      %p27 = scmp.ge.s32.totalorder %s26, 1
      %s28 = scalar_select %p27, 0, %s26
      %s29 = sadd.s32 1, %s20
      %s30 = scalar_select %p27, %s29, %s20
      %p31 = scmp.ge.s32.totalorder %s30, 2
      %s32 = scalar_select %p31, 0, %s30
      %s33 = ssub.s32 %s20, %s32
      %p34 = scmp.eq.s32.totalorder %s33, 0
      %s36 = sadd.s32 %s35, 1
      %s37 = scalar_select %p34, %s35, %s36
      %p40 = pneg %p34
      %p41 = scmp.eq.s32.totalorder %s13, 1
      %p42 = por %p40, %p41
      %p43 = scmp.ne.s32.totalorder %s35, %s38
      %p44 = scmp.eq.s32.totalorder %s13, 0
      %p45 = por %p43, %p44
      %p46 = scmp.ne.s32.totalorder %s35, %s38
      %p47 = scmp.eq.s32.totalorder %s18, 1
      %p48 = por %p46, %p47
      %p49 = scmp.ne.s32.totalorder %s38, %s39
      %p50 = scmp.eq.s32.totalorder %s18, 0
      %p51 = por %p49, %p50
      %p52 = scmp.ne.s32.totalorder %s38, %s39
      %p53 = scmp.eq.s32.totalorder %s19, 1
      %p54 = por %p52, %p53
      %p56 = scmp.ne.s32.totalorder %s39, %s55
      %p57 = scmp.eq.s32.totalorder %s19, 0
      %p58 = por %p56, %p57
      %s59 = ssub.s32 %s20, %s32
      %s60 = ssub.s32 %s21, %s28
      %s61 = sor.u32 %s59, %s60
      %p62 = scmp.eq.s32.totalorder %s61, 0
      %s64 = sadd.s32 %s63, 1
      %s65 = scalar_select %p62, %s63, %s64
      %p68 = pneg %p62
      %p69 = scmp.eq.s32.totalorder %s13, 1
      %p70 = por %p68, %p69
      %p71 = scmp.ne.s32.totalorder %s63, %s66
      %p72 = scmp.eq.s32.totalorder %s13, 0
      %p73 = por %p71, %p72
      %p74 = scmp.ne.s32.totalorder %s63, %s66
      %p75 = scmp.eq.s32.totalorder %s18, 1
      %p76 = por %p74, %p75
      %p77 = scmp.ne.s32.totalorder %s66, %s67
      %p78 = scmp.eq.s32.totalorder %s18, 0
      %p79 = por %p77, %p78
      %p80 = scmp.ne.s32.totalorder %s66, %s67
      %p81 = scmp.eq.s32.totalorder %s19, 1
      %p82 = por %p80, %p81
      %p84 = scmp.ne.s32.totalorder %s67, %s83
      %p85 = scmp.eq.s32.totalorder %s19, 0
      %p86 = por %p84, %p85
      %p87 = scmp.le.s32.totalorder 1, %s13
      %p88 = scmp.lt.s32.totalorder %s13, 3
      %p89 = pnand %p87, %p88
      %p90 = pneg %p89
      // Predicated region
      $region9: #{tpu_custom_call.1} parent=5 // pred_check
        _
      $region10: #{tpu_custom_call.1} parent=5 // pred_check_branch
        %92 = sbr.rel (%p89) target = $region12
      $region11: #{tpu_custom_call.1} parent=5 // pred_region
        %s93 = ssub.s32 %s13, 1
      $region12: #{tpu_custom_call.1} parent=5 // pred_fallthru
        _
      %p94 = scmp.lt.s32.totalorder %s13, 2
      // Predicated region
      $region13: #{tpu_custom_call.1} parent=5 // pred_check
        %p95 = pneg %p94
      $region14: #{tpu_custom_call.1} parent=5 // pred_check_branch
        %97 = sbr.rel (%p95) target = $region16
      $region15: #{tpu_custom_call.1} parent=5 // pred_region
        // Predicated region
        $region17: #{tpu_custom_call.1} parent=15 // pred_check
          %p98 = pneg %p45
        $region18: #{tpu_custom_call.1} parent=15 // pred_check_branch
          %100 = sbr.rel (%p98) target = $region20
        $region19: #{tpu_custom_call.1} parent=15 // pred_region
          %s101 = sand.u32 %s35, 1
          %s102 = scalar_lea.sflag [#allocation3], %s101
          %s103 = sand.u32 %s35, 1
          %s104 = smul.addr %s103, 8
          %s105 = scalar_lea.vmem [#allocation2], %s104
          %s107 = ssub.s32 128, 128
          %108 = vsyncadd %s102, %s107
          %s109 = smul.addr %s20, 128
          %s110 = scalar_lea.hbm %s0, %s109
          %s112 = sshll.u32 %s105, 4
          %s113 = int_to_ptr.vmem [resolvable:$true] %s112
          %115 = dma.hbm_to_vmem [thread:$0]  %s110, 128, %s113, %s102
        $region20: #{tpu_custom_call.1} parent=15 // pred_fallthru
          _
      $region16: #{tpu_custom_call.1} parent=5 // pred_fallthru
        _
      %p116 = scmp.le.s32.totalorder 1, %s13
      %p117 = scmp.lt.s32.totalorder %s13, 3
      %p118 = pnand %p116, %p117
      %p119 = pneg %p118
      // Predicated region
      $region21: #{tpu_custom_call.1} parent=5 // pred_check
        _
      $region22: #{tpu_custom_call.1} parent=5 // pred_check_branch
        %121 = sbr.rel (%p118) target = $region24
      $region23: #{tpu_custom_call.1} parent=5 // pred_region
        %s122 = ssub.s32 %s13, 1
        %s123 = sand.u32 %s38, 1
        %s124 = scalar_lea.sflag [#allocation3], %s123
        %s125 = sand.u32 %s38, 1
        %s126 = smul.addr %s125, 8
        %s127 = scalar_lea.vmem [#allocation2], %s126
        // Predicated region
        $region25: #{tpu_custom_call.1} parent=23 // pred_check
          %p128 = pneg %p51
        $region26: #{tpu_custom_call.1} parent=23 // pred_check_branch
          %130 = sbr.rel (%p128) target = $region28
        $region27: #{tpu_custom_call.1} parent=23 // pred_region
          %131 = dma.done %s124, 128
        $region28: #{tpu_custom_call.1} parent=23 // pred_fallthru
          _
        %s132 = sand.u32 %s38, 1
        %s133 = scalar_lea.sflag [#allocation3], %s132
        %s134 = sand.u32 %s38, 1
        %s135 = smul.addr %s134, 8
        %s136 = scalar_lea.vmem [#allocation2], %s135
        %p137 = pneg %p51
        %p138 = pneg %p48
        %p139 = pneg %p79
        %p140 = pneg %p76
        %s141 = sand.u32 %s66, 1
        %s142 = scalar_lea.sflag [#allocation4], %s141
        %s143 = sand.u32 %s66, 1
        %s144 = smul.addr %s143, 8
        %s145 = scalar_lea.vmem [#allocation5], %s144
        %s146 = smul.u32 %s23, 8
        %s147 = scalar_lea.vmem %s127, %s146 [#allocation2]
        %v148 = vld [vmem:[%s147] sm:$0xff]
        %v149 = vld [vmem:[%s127] sm:$0xff]
        %vm150 = vcmask 261120
        %v152 = vsel %vm150, %v148, 0
        %v155 = vsel %vm150, %v149, 0
        %157 = vmatprep.subr.mxu0 0.0
        %158 = vmatpush1.xpose.msra.mxu0 %v155
        %159 = vmatprep.subr.mxu0 0.0
        %160 = vmatpush1.xpose.msra.mxu0 0.0
        %161 = vmatprep.subr.mxu0 0.0
        %162 = vmatpush1.xpose.msra.mxu0 0.0
        %163 = vmatprep.subr.mxu0 0.0
        %164 = vmatpush1.xpose.msra.mxu0 0.0
        %165 = vmatprep.subr.mxu0 0.0
        %166 = vmatpush1.xpose.msra.mxu0 0.0
        %167 = vmatprep.subr.mxu0 0.0
        %168 = vmatpush1.xpose.msra.mxu0 0.0
        %169 = vmatprep.subr.mxu0 0.0
        %170 = vmatpush1.xpose.msra.mxu0 0.0
        %171 = vmatprep.subr.mxu0 0.0
        %172 = vmatpush1.xpose.msra.mxu0 0.0
        %173 = vmatprep.subr.mxu0 0.0
        %174 = vmatpush1.xpose.msra.mxu0 0.0
        %175 = vmatprep.subr.mxu0 0.0
        %176 = vmatpush1.xpose.msra.mxu0 0.0
        %177 = vmatprep.subr.mxu0 0.0
        %178 = vmatpush1.xpose.msra.mxu0 0.0
        %179 = vmatprep.subr.mxu0 0.0
        %180 = vmatpush1.xpose.msra.mxu0 0.0
        %181 = vmatprep.subr.mxu0 0.0
        %182 = vmatpush1.xpose.msra.mxu0 0.0
        %183 = vmatprep.subr.mxu0 0.0
        %184 = vmatpush1.xpose.msra.mxu0 0.0
        %185 = vmatprep.subr.mxu0 0.0
        %186 = vmatpush1.xpose.msra.mxu0 0.0
        %187 = vmatprep.subr.mxu0 0.0
        %188 = vmatpush1.xpose.msra.mxu0 0.0
        %189 = vmatprep.subr.mxu0 0.0
        %190 = vmatpush1.xpose.msra.mxu0 0.0
        %191 = vmatprep.subr.mxu0 0.0
        %192 = vmatpush1.xpose.msra.mxu0 0.0
        %193 = vmatprep.subr.mxu0 0.0
        %194 = vmatpush1.xpose.msra.mxu0 0.0
        %195 = vmatprep.subr.mxu0 0.0
        %196 = vmatpush1.xpose.msra.mxu0 0.0
        %197 = vmatprep.subr.mxu0 0.0
        %198 = vmatpush1.xpose.msra.mxu0 0.0
        %199 = vmatprep.subr.mxu0 0.0
        %200 = vmatpush1.xpose.msra.mxu0 0.0
        %201 = vmatprep.subr.mxu0 0.0
        %202 = vmatpush1.xpose.msra.mxu0 0.0
        %203 = vmatprep.subr.mxu0 0.0
        %204 = vmatpush1.xpose.msra.mxu0 0.0
        %205 = vmatprep.subr.mxu0 0.0
        %206 = vmatpush1.xpose.msra.mxu0 0.0
        %207 = vmatprep.subr.mxu0 0.0
        %208 = vmatpush1.xpose.msra.mxu0 0.0
        %209 = vmatprep.subr.mxu0 0.0
        %210 = vmatpush1.xpose.msra.mxu0 0.0
        %211 = vmatprep.subr.mxu0 0.0
        %212 = vmatpush1.xpose.msra.mxu0 0.0
        %213 = vmatprep.subr.mxu0 0.0
        %214 = vmatpush1.xpose.msra.mxu0 0.0
        %215 = vmatprep.subr.mxu0 0.0
        %216 = vmatpush1.xpose.msra.mxu0 0.0
        %217 = vmatprep.subr.mxu0 0.0
        %218 = vmatpush1.xpose.msra.mxu0 0.0
        %219 = vmatprep.subr.mxu0 0.0
        %220 = vmatpush1.xpose.msra.mxu0 0.0
        %221 = vmatprep.mubr.f32.mxu0 0.0
        %222 = vmatmul.mubr.f32.gmra.mrb[0].mxu0 %v152
        %v223 = vpop.f32.mrb[0].mxu0
        %v224 = vadd.f32 0.0, %v223
        %v225 = vpop.f32.mrb[0].mxu0
        %226 = vdwg.mxu0
        %v227 = vmul.f32 %v224, 0.5
        %v228 = vtanh.pop %v227
        %v229 = vadd.f32 %v228, 1.0
        %v230 = vmul.f32 %v229, 0.5
        %vm231 = vcmask 64512
        %232 = vst.msk [vmem:[%s145] sm:$0xff] %vm231, %v230
        %s233 = sand.u32 %s66, 1
        %s234 = scalar_lea.sflag [#allocation4], %s233
        %s235 = sand.u32 %s66, 1
        %s236 = smul.addr %s235, 8
        %s237 = scalar_lea.vmem [#allocation5], %s236
        // Predicated region
        $region29: #{tpu_custom_call.1} parent=23 // pred_check
          %p238 = pneg %p76
        $region30: #{tpu_custom_call.1} parent=23 // pred_check_branch
          %240 = sbr.rel (%p238) target = $region32
        $region31: #{tpu_custom_call.1} parent=23 // pred_region
          %s242 = ssub.s32 128, 128
          %243 = vsyncadd %s234, %s242
          %s244 = sadd.s32 %s23, %s22
          %s245 = smul.addr %s244, 128
          %s246 = scalar_lea.hbm %s1, %s245
          %s248 = sshll.u32 %s237, 4
          %s249 = int_to_ptr.vmem [resolvable:$true] %s248
          %251 = dma.vmem_to_hbm [thread:$0]  %s249, 128, %s246, %s234
        $region32: #{tpu_custom_call.1} parent=23 // pred_fallthru
          _
      $region24: #{tpu_custom_call.1} parent=5 // pred_fallthru
        _
      %p252 = scmp.le.s32.totalorder 2, %s13
      // Predicated region
      $region33: #{tpu_custom_call.1} parent=5 // pred_check
        %p253 = pneg %p252
      $region34: #{tpu_custom_call.1} parent=5 // pred_check_branch
        %255 = sbr.rel (%p253) target = $region36
      $region35: #{tpu_custom_call.1} parent=5 // pred_region
        %s256 = ssub.s32 %s13, 2
        // Predicated region
        $region37: #{tpu_custom_call.1} parent=35 // pred_check
          %p257 = pneg %p82
        $region38: #{tpu_custom_call.1} parent=35 // pred_check_branch
          %259 = sbr.rel (%p257) target = $region40
        $region39: #{tpu_custom_call.1} parent=35 // pred_region
          %s260 = sand.u32 %s67, 1
          %s261 = scalar_lea.sflag [#allocation4], %s260
          %s262 = sand.u32 %s67, 1
          %s263 = smul.addr %s262, 8
          %s264 = scalar_lea.vmem [#allocation5], %s263
          %265 = dma.done %s261, 128
        $region40: #{tpu_custom_call.1} parent=35 // pred_fallthru
          _
      $region36: #{tpu_custom_call.1} parent=5 // pred_fallthru
        _
    $region6: #{tpu_custom_call.1} parent=1 // loop_footer
      %s17 = sadd.s32 1, %s13
    $region7: #{tpu_custom_call.1} parent=1 // loop_footer_branch
      %12 = sbr.rel target = $region3
    $region8: #{tpu_custom_call.1} parent=1 // loop_exit
      _
    %266 = vsyncpa [#allocation3], 1
    %s267 = scalar_lea.sflag [#allocation3], 1
    %268 = vsyncpa %s267, 1
    %269 = vsyncpa [#allocation4], 1
    %s270 = scalar_lea.sflag [#allocation4], 1
    %271 = vsyncpa %s270, 1

</llo_original>
